<compile_context>
chip_gen: v7x
topology: tpu7x:2x2x1
jax: 0.10.0
libtpu: 0.0.40
codegen_flags: <defaults>
</compile_context>

<pallas_src>
import numpy as np
import jax
import jax.numpy as jnp
from jax.experimental import pallas as pl
from jax.experimental.pallas import tpu as pltpu


# ----------------------------- tiling helpers -----------------------------

def _round_up(x, m):
    return ((x + m - 1) // m) * m


def _pick_row_tile(n, cap=512):
    """Largest divisor of n that is <= cap and sublane friendly (mult of 8 or == n)."""
    for t in range(min(n, cap), 0, -1):
        if n % t == 0 and (t % 8 == 0 or t == n):
            return t
    return n


def _pick_tq_rows(T, P, max_tq=256):
    """Largest divisor of T whose flattened q tile (rows*P) is <= max_tq and 8-aligned."""
    cap = max(1, max_tq // P)
    for d in range(min(T, cap), 0, -1):
        if T % d == 0 and ((d * P) % 8 == 0 or d == T):
            return d
    return T


def _vmem_limit_bytes():
    """min(96 MiB, 3/4 of physical VMEM): raises the 32 MiB scoped default on
    v5e/v6e (128 MiB), stays <= 48 MiB on v7x (64 MiB)."""
    try:
        cap = int(pltpu.get_tpu_info().vmem_capacity_bytes)
    except Exception:
        cap = 128 * 1024 * 1024
    return min(96 * 1024 * 1024, (cap * 3) // 4)


# ----------------------------- Pallas kernels -----------------------------

def stem_kernel(x_ref, w_ref, b_ref, o_ref):
    # x_ref: (TN, Cin_pad) bf16, w_ref: (Cin_pad, C) bf16, b_ref: (1, C) f32
    y = jnp.dot(x_ref[...], w_ref[...], preferred_element_type=jnp.float32)
    o_ref[...] = jnp.maximum(y + b_ref[...], 0.0).astype(o_ref.dtype)


def make_na_kernel(*, T, P, K, n_head, C, tq_rows, KVR, KVB_pad):
    hd = C // n_head
    scale = float(hd) ** -0.5
    NH = K // 2
    TQ = tq_rows * P                       # queries per grid step (flattened)

    nn_proj = (((2,), (1,)), ((0,), (0,)))   # batched 'hqc,hcd->hqd'

    def kernel(case_ref, h_ref, wq_ref, bq_ref, wk_ref, bk_ref, wv_ref, bv_ref,
               wp_ref, bp_ref, bias_ref, o_ref):
        del case_ref                        # consumed by the bias index_map only
        qi = pl.program_id(1)
        t_lo = qi * tq_rows
        q_start = qi * TQ
        kv_t0 = jnp.clip(t_lo - NH, 0, T - KVR)    # first time row of the kv band
        kv_start = kv_t0 * P
        if TQ % 8 == 0:
            q_start = pl.multiple_of(q_start, 8)
        if P % 8 == 0:
            kv_start = pl.multiple_of(kv_start, 8)

        # activations for this q tile / its (lane-padded) kv band, sliced from
        # the per-batch resident bf16 block.
        hq = h_ref[0, pl.ds(q_start, TQ), :]              # (TQ, C) bf16
        hk = h_ref[0, pl.ds(kv_start, KVB_pad), :]        # (KVB_pad, C) bf16
        hq_b = jnp.broadcast_to(hq[None], (n_head, TQ, C))
        hk_b = jnp.broadcast_to(hk[None], (n_head, KVB_pad, C))

        qh = (jax.lax.dot_general(hq_b, wq_ref[...], nn_proj,
                                  preferred_element_type=jnp.float32)
              + bq_ref[...]) * scale                       # (H, TQ, hd)
        kh = jax.lax.dot_general(hk_b, wk_ref[...], nn_proj,
                                 preferred_element_type=jnp.float32) + bk_ref[...]
        vh = jax.lax.dot_general(hk_b, wv_ref[...], nn_proj,
                                 preferred_element_type=jnp.float32) + bv_ref[...]

        # scores: batched 'hqd,hkd->hqk' on full 128-lane tiles
        s = jax.lax.dot_general(qh.astype(jnp.bfloat16), kh.astype(jnp.bfloat16),
                                (((2,), (2,)), ((0,), (0,))),
                                preferred_element_type=jnp.float32)  # (H, TQ, KVB_pad)

        # precomputed neighborhood bias tile (includes -1e30 for invalid /
        # padded key columns); single f32 add, no reconstruction loop.
        s = s + bias_ref[0]

        # ---- softmax (f32) ----
        m = jnp.max(s, axis=-1, keepdims=True)
        p = jnp.exp(s - m)
        denom = jnp.sum(p, axis=-1, keepdims=True)
        p = p * pl.reciprocal(denom, approx=True)

        # ---- PV and output projection (head merge folded into sum) ----
        o = jax.lax.dot_general(p.astype(jnp.bfloat16), vh.astype(jnp.bfloat16),
                                (((2,), (1,)), ((0,), (0,))),
                                preferred_element_type=jnp.float32)  # (H, TQ, hd)
        oc = jax.lax.dot_general(o.astype(jnp.bfloat16), wp_ref[...], nn_proj,
                                 preferred_element_type=jnp.float32)  # (H, TQ, C)
        o_ref[0] = (jnp.sum(oc, axis=0) + bp_ref[...]).astype(o_ref.dtype)

    return kernel


# ----------------------------- wrappers -----------------------------

def pallas_linear_relu(x2, w, b, tile_rows):
    rows, cin = x2.shape
    cout = w.shape[1]
    return pl.pallas_call(
        stem_kernel,
        out_shape=jax.ShapeDtypeStruct((rows, cout), jnp.bfloat16),
        grid=(rows // tile_rows,),
        in_specs=[
            pl.BlockSpec((tile_rows, cin), lambda i: (i, 0)),
            pl.BlockSpec((cin, cout), lambda i: (0, 0)),
            pl.BlockSpec((1, cout), lambda i: (0, 0)),
        ],
        out_specs=pl.BlockSpec((tile_rows, cout), lambda i: (i, 0)),
        compiler_params=pltpu.CompilerParams(
            dimension_semantics=("parallel",),
            vmem_limit_bytes=_vmem_limit_bytes()),
    )(x2, w, b)


def pallas_na_layer(h, case_idx, bias_cases, wq, bq, wk, bk, wv, bv, wp, bp, *,
                    T, P, K, n_head, tq_rows, KVR, KVB_pad):
    B, HW, C = h.shape
    hd = C // n_head
    TQ = tq_rows * P
    num_q = T // tq_rows

    # zero-pad rows so every (lane-padded) kv band slice stays in bounds;
    # padded key columns are killed by -1e30 in the bias tiles.
    HW_pad = (T - KVR) * P + KVB_pad
    if HW_pad > HW:
        h = jnp.pad(h, ((0, 0), (0, HW_pad - HW), (0, 0)))

    kernel = make_na_kernel(T=T, P=P, K=K, n_head=n_head, C=C,
                            tq_rows=tq_rows, KVR=KVR, KVB_pad=KVB_pad)

    grid_spec = pltpu.PrefetchScalarGridSpec(
        num_scalar_prefetch=1,            # case_idx -> SMEM, read in the bias index_map
        grid=(B, num_q),
        in_specs=[
            pl.BlockSpec((1, HW_pad, C), lambda b, qi, c: (b, 0, 0)),        # h (per-batch resident)
            pl.BlockSpec((n_head, C, hd), lambda b, qi, c: (0, 0, 0)),       # wq
            pl.BlockSpec((n_head, 1, hd), lambda b, qi, c: (0, 0, 0)),       # bq
            pl.BlockSpec((n_head, C, hd), lambda b, qi, c: (0, 0, 0)),       # wk
            pl.BlockSpec((n_head, 1, hd), lambda b, qi, c: (0, 0, 0)),       # bk
            pl.BlockSpec((n_head, C, hd), lambda b, qi, c: (0, 0, 0)),       # wv
            pl.BlockSpec((n_head, 1, hd), lambda b, qi, c: (0, 0, 0)),       # bv
            pl.BlockSpec((n_head, hd, C), lambda b, qi, c: (0, 0, 0)),       # wproj (per head)
            pl.BlockSpec((1, C), lambda b, qi, c: (0, 0)),                   # bproj
            pl.BlockSpec((1, n_head, TQ, KVB_pad),
                         lambda b, qi, c: (c[qi], 0, 0, 0)),                 # bias tile (by case)
        ],
        out_specs=pl.BlockSpec((1, TQ, C), lambda b, qi, c: (b, qi, 0)),
    )
    return pl.pallas_call(
        kernel,
        out_shape=jax.ShapeDtypeStruct((B, HW, C), jnp.bfloat16),
        grid_spec=grid_spec,
        compiler_params=pltpu.CompilerParams(
            dimension_semantics=("parallel", "parallel"),
            vmem_limit_bytes=_vmem_limit_bytes()),
    )(case_idx, h, wq, bq, wk, bk, wv, bv, wp, bp, bias_cases)


# ------------- precomputed neighborhood-bias tiles (host-side glue) -------------

def build_bias_cases(rpb, T, P, K, tq_rows, KVR, KVB_pad):
    """Per-query-tile additive bias tiles, deduplicated into cases.

    Returns (bias_cases (n_cases, H, TQ, KVB_pad) f32, case_idx (num_q,) i32).
    Padded key columns (>= KVR*P) and out-of-neighborhood positions get -1e30.
    Interior tiles all share one byte-identical pattern, so n_cases is O(K)
    and independent of HW."""
    NH = K // 2
    num_q = T // tq_rows
    TQ = tq_rows * P
    KVB = KVR * P
    rpb_np = np.asarray(rpb, dtype=np.float32)            # (H, 2K-1, 2K-1)
    lq = np.arange(TQ)
    lk = np.arange(KVB_pad)
    tiles, cache = [], {}
    case_of = np.zeros((num_q,), np.int32)
    for qi in range(num_q):
        t_lo = qi * tq_rows
        kv_t0 = int(np.clip(t_lo - NH, 0, T - KVR))       # same formula as the kernel
        tq_ = t_lo + lq // P
        pq = lq % P
        tk_ = kv_t0 + lk // P
        pk = lk % P
        ni = np.clip(tq_ - NH, 0, T - K)
        nj = np.clip(pq - NH, 0, P - K)
        valid = ((tk_[None, :] >= ni[:, None]) & (tk_[None, :] < ni[:, None] + K) &
                 (pk[None, :] >= nj[:, None]) & (pk[None, :] < nj[:, None] + K) &
                 (lk[None, :] < KVB))
        ri = np.clip(tk_[None, :] - tq_[:, None] + K - 1, 0, 2 * K - 2)
        rj = np.clip(pk[None, :] - pq[:, None] + K - 1, 0, 2 * K - 2)
        tile = rpb_np[:, ri, rj]                           # (H, TQ, KVB_pad)
        tile = np.where(valid[None], tile, np.float32(-1e30)).astype(np.float32)
        key = tile.tobytes()
        if key not in cache:
            cache[key] = len(tiles)
            tiles.append(tile)
        case_of[qi] = cache[key]
    return jnp.asarray(np.stack(tiles, axis=0)), jnp.asarray(case_of)


def build_na_bias(rpb, H, W, K):
    """Dense (heads, HW, HW) bias -- used ONLY by the pure-JAX reference."""
    NH = K // 2
    ii = jnp.arange(H)
    jj = jnp.arange(W)
    ni = jnp.clip(ii - NH, 0, H - K)
    nj = jnp.clip(jj - NH, 0, W - K)
    valid_r = (ii[None, :] >= ni[:, None]) & (ii[None, :] < ni[:, None] + K)
    valid_c = (jj[None, :] >= nj[:, None]) & (jj[None, :] < nj[:, None] + K)
    ri = jnp.clip(ii[None, :] - ii[:, None] + (K - 1), 0, 2 * K - 2)
    rj = jnp.clip(jj[None, :] - jj[:, None] + (K - 1), 0, 2 * K - 2)
    g = rpb[:, ri, :]
    g = g[:, :, :, rj]
    valid = valid_r[:, :, None, None] & valid_c[None, None, :, :]
    bias = jnp.where(valid[None], g, jnp.float32(-1e30))
    return bias.transpose(0, 1, 3, 2, 4).reshape(rpb.shape[0], H * W, H * W).astype(jnp.float32)


# ----------------------------- full forward -----------------------------

def natten_forward(params, x, condition, mask, *, window, n_head, n_layers):
    B, T, P, C = x.shape
    assert C % n_head == 0
    hd = C // n_head
    HW = T * P
    K = window

    # stem: Linear(C+3 -> C) + ReLU, row-tiled, bf16 in / bf16 out.
    cat = jnp.concatenate([x, condition, mask[..., None]], axis=-1)   # (B,T,P,C+3)
    cin = C + 3
    cin_pad = _round_up(cin, 8)
    cat2 = cat.reshape(B * HW, cin)
    if cin_pad != cin:
        cat2 = jnp.pad(cat2, ((0, 0), (0, cin_pad - cin)))
    cat2 = cat2.astype(jnp.bfloat16)
    w1 = jnp.pad(params["w1"], ((0, cin_pad - cin), (0, 0))).astype(jnp.bfloat16)
    h = pallas_linear_relu(cat2, w1, params["b1"].astype(jnp.float32),
                           _pick_row_tile(B * HW, 512))
    h = h.reshape(B, HW, C)

    # shared NeighborhoodAttention2D weights, pre-split per head (plain JAX glue,
    # done once) so the kernel never slices at non-lane-aligned offsets.
    wqkv, bqkv = params["wqkv"], params["bqkv"]

    def heads_w(w):   # (C, C) -> (H, C, hd)
        return jnp.transpose(w.reshape(C, n_head, hd), (1, 0, 2)).astype(jnp.bfloat16)

    def heads_b(b):   # (C,) -> (H, 1, hd)
        return b.reshape(n_head, 1, hd).astype(jnp.float32)

    wq, bq = heads_w(wqkv[:, :C]), heads_b(bqkv[0, :C])
    wk, bk = heads_w(wqkv[:, C:2 * C]), heads_b(bqkv[0, C:2 * C])
    wv, bv = heads_w(wqkv[:, 2 * C:]), heads_b(bqkv[0, 2 * C:])
    wp = params["wproj"].reshape(n_head, hd, C).astype(jnp.bfloat16)
    bp = params["bproj"].astype(jnp.float32)

    # query tiling / kv-band geometry (lane padded) + precomputed bias tiles.
    tq_rows = _pick_tq_rows(T, P, 256)
    KVR = min(T, tq_rows + K - 1)
    KVB_pad = _round_up(KVR * P, 128)
    bias_cases, case_idx = build_bias_cases(params["rpb"], T, P, K,
                                            tq_rows, KVR, KVB_pad)

    for _ in range(n_layers):  # same module instance repeated -> shared weights
        h = pallas_na_layer(h, case_idx, bias_cases, wq, bq, wk, bk, wv, bv, wp, bp,
                            T=T, P=P, K=K, n_head=n_head,
                            tq_rows=tq_rows, KVR=KVR, KVB_pad=KVB_pad)
    return h.reshape(B, T, P, C).astype(jnp.float32)


def reference_forward(params, x, condition, mask, *, window, n_head, n_layers):
    """Pure-JAX f32 reference (same semantics) used only for verification."""
    B, T, P, C = x.shape
    hd = C // n_head
    scale = float(hd) ** -0.5
    cat = jnp.concatenate([x, condition, mask[..., None]], axis=-1).reshape(B, T * P, C + 3)
    h = jnp.maximum(cat @ params["w1"] + params["b1"][0], 0.0)
    bias = build_na_bias(params["rpb"], T, P, window)
    for _ in range(n_layers):
        qkv = h @ params["wqkv"] + params["bqkv"][0]
        q = (qkv[..., :C] * scale).reshape(B, T * P, n_head, hd).transpose(0, 2, 1, 3)
        k = qkv[..., C:2 * C].reshape(B, T * P, n_head, hd).transpose(0, 2, 1, 3)
        v = qkv[..., 2 * C:].reshape(B, T * P, n_head, hd).transpose(0, 2, 1, 3)
        s = jnp.einsum("bhqd,bhkd->bhqk", q, k) + bias[None]
        a = jax.nn.softmax(s, axis=-1)
        o = jnp.einsum("bhqk,bhkd->bhqd", a, v).transpose(0, 2, 1, 3).reshape(B, T * P, C)
        h = o @ params["wproj"] + params["bproj"][0]
    return h.reshape(B, T, P, C)


# ----------------------------- parameter init -----------------------------

def init_params(key, hidden_per_pitch, window, n_head):
    C = hidden_per_pitch
    ks = jax.random.split(key, 6)

    def lin(k, fan_in, shape):
        return jax.random.normal(k, shape, jnp.float32) / np.sqrt(fan_in)

    return {
        # stem: Linear(hidden_per_pitch + 3 -> hidden_per_pitch) + ReLU
        "w1": lin(ks[0], C + 3, (C + 3, C)),
        "b1": 0.01 * jnp.ones((1, C), jnp.float32),
        # NeighborhoodAttention2D(dim=C, heads=4, kernel=window), weights shared across layers
        "wqkv": lin(ks[1], C, (C, 3 * C)),
        "bqkv": 0.1 * lin(ks[2], C, (1, 3 * C)),
        "rpb": 0.3 * jax.random.normal(ks[3], (n_head, 2 * window - 1, 2 * window - 1),
                                       jnp.float32),
        "wproj": lin(ks[4], C, (C, C)),
        "bproj": 0.1 * lin(ks[5], C, (1, C)),
    }


# ----------------------------- main -----------------------------

if __name__ == "__main__":
    B, T, P = 2, 12, 8                # batch, time frames, pitches (small synthetic shapes)
    hidden_per_pitch = 16
    window = 5                        # kernel size (must be <= T and <= P)
    n_head = 4
    n_layers = 2
    assert T >= window and P >= window

    key = jax.random.PRNGKey(0)
    kx, kc, km, kp = jax.random.split(key, 4)
    x = jax.random.normal(kx, (B, T, P, hidden_per_pitch), jnp.float32)
    condition = jax.random.normal(kc, (B, T, P, 2), jnp.float32)
    mask = (jax.random.uniform(km, (B, T, P)) > 0.5).astype(jnp.float32)
    params = init_params(kp, hidden_per_pitch, window, n_head)

    out = natten_forward(params, x, condition, mask,
                         window=window, n_head=n_head, n_layers=n_layers)
    out = jax.block_until_ready(out)

    ref = reference_forward(params, x, condition, mask,
                            window=window, n_head=n_head, n_layers=n_layers)
    assert out.shape == (B, T, P, hidden_per_pitch)
    # bf16 matmul operands + bf16 inter-layer activations (f32 accumulation,
    # f32 softmax, approx reciprocal) vs. an all-f32 reference -> loose tolerance.
    np.testing.assert_allclose(np.asarray(out), np.asarray(ref), rtol=6e-2, atol=1.2e-1)
    print("KERNEL_OK")
</pallas_src>

<mosaic_0001>
module attributes {stable_mosaic.version = 11 : i64} {
  func.func @stem_kernel(%arg0: i32, %arg1: memref<192x24xbf16, #tpu.memory_space<vmem>>, %arg2: memref<24x16xbf16, #tpu.memory_space<vmem>>, %arg3: memref<1x16xf32, #tpu.memory_space<vmem>>, %arg4: memref<192x16xbf16, #tpu.memory_space<vmem>>) attributes {dimension_semantics = [#tpu.dimension_semantics<parallel>], iteration_bounds = array<i64: 1>, scalar_prefetch = 0 : i64, scratch_operands = 0 : i64, tpu.core_type = #tpu.core_type<tc>, window_params = [{transform_indices = @transform_0, window_bounds = array<i64: 192, 24>}, {pipeline_mode = #tpu.pipeline_mode<synchronous>, transform_indices = @transform_1, window_bounds = array<i64: 24, 16>}, {pipeline_mode = #tpu.pipeline_mode<synchronous>, transform_indices = @transform_2, window_bounds = array<i64: 1, 16>}, {transform_indices = @transform_3, window_bounds = array<i64: 192, 16>}]} {
    %c0 = arith.constant 0 : index
    %c0_0 = arith.constant 0 : index
    %0 = vector.load %arg1[%c0, %c0_0] : memref<192x24xbf16, #tpu.memory_space<vmem>>, vector<192x24xbf16>
    %c0_1 = arith.constant 0 : index
    %c0_2 = arith.constant 0 : index
    %1 = vector.load %arg2[%c0_1, %c0_2] : memref<24x16xbf16, #tpu.memory_space<vmem>>, vector<24x16xbf16>
    %cst = arith.constant dense<0.000000e+00> : vector<192x16xf32>
    %2 = tpu.matmul %0, %1, %cst {dimension_numbers = #tpu.dot_dimension_numbers<[1], [0], [0], [1], [0, 0, 1, 1], [], []>} : vector<192x24xbf16>, vector<24x16xbf16>, vector<192x16xf32> -> vector<192x16xf32>
    %c0_3 = arith.constant 0 : index
    %c0_4 = arith.constant 0 : index
    %3 = vector.load %arg3[%c0_3, %c0_4] : memref<1x16xf32, #tpu.memory_space<vmem>>, vector<1x16xf32>
    %4 = vector.broadcast %3 : vector<1x16xf32> to vector<192x16xf32>
    %5 = arith.addf %2, %4 : vector<192x16xf32>
    %cst_5 = arith.constant 0.000000e+00 : f32
    %6 = vector.broadcast %cst_5 : f32 to vector<192x16xf32>
    %7 = arith.maximumf %5, %6 : vector<192x16xf32>
    %8 = arith.truncf %7 : vector<192x16xf32> to vector<192x16xbf16>
    %c0_6 = arith.constant 0 : index
    %c0_7 = arith.constant 0 : index
    %9 = vector.load %arg4[%c0_6, %c0_7] : memref<192x16xbf16, #tpu.memory_space<vmem>>, vector<192x16xbf16>
    tpu.vector_store %arg4[%c0_6, %c0_7], %8 {strides = array<i32>} : memref<192x16xbf16, #tpu.memory_space<vmem>>, vector<192x16xbf16>,
    return
  }
  func.func @transform_0(%arg0: i32) -> (i32, i32) {
    %c0_i32 = arith.constant 0 : i32
    %c0_i32_0 = arith.constant 0 : i32
    return %arg0, %c0_i32 : i32, i32
  }
  func.func @transform_1(%arg0: i32) -> (i32, i32) {
    %c0_i32 = arith.constant 0 : i32
    %c0_i32_0 = arith.constant 0 : i32
    %c0_i32_1 = arith.constant 0 : i32
    return %c0_i32, %c0_i32_0 : i32, i32
  }
  func.func @transform_2(%arg0: i32) -> (i32, i32) {
    %c0_i32 = arith.constant 0 : i32
    %c0_i32_0 = arith.constant 0 : i32
    %c0_i32_1 = arith.constant 0 : i32
    return %c0_i32, %c0_i32_0 : i32, i32
  }
  func.func @transform_3(%arg0: i32) -> (i32, i32) {
    %c0_i32 = arith.constant 0 : i32
    %c0_i32_0 = arith.constant 0 : i32
    return %arg0, %c0_i32 : i32, i32
  }
}

</mosaic_0001>

<llo_original>
// kernel: tpu_custom_call.1
$region0: #{tpu_custom_call.1}
  #allocation0 [shape = 'u32[]', space=smem, size = 0x4, offset = 0x4, fixed_abs, tag = 'smem constant byte address 0x4 - core index']
  #allocation1 [shape = 'u32[144,128]{1,0:T(1,128)}', space=vmem, size = 0x12000, scoped, tag = 'internal scratch']
  %s0 = inlined_call_operand.hbm [shape: bf16[192,24], index: 0, kind: input, shape index: {}]
  %s1 = inlined_call_operand.hbm [shape: bf16[24,16], index: 1, kind: input, shape index: {}]
  %s2 = inlined_call_operand.hbm [shape: f32[1,16], index: 2, kind: input, shape index: {}]
  %s3 = inlined_call_operand.hbm [shape: bf16[192,16], index: 3, kind: output, shape index: {}]
  %s4 = sld [smem:[#allocation0]]
  $region34: #{tpu_custom_call.1} parent=0
    _
  %s6 = ssub.s32 1, %s4
  %s7 = scalar_select 0, %s6, %s4
  $region1: #{tpu_custom_call.1} parent=0
    #allocation2 [shape = 'u8[49152]{0}', space=vmem, size = 0xc000, scoped, tag = 'input window, operand 0, single buffered']
    #allocation3 [shape = 's32[1]{0}', space=sflag, size = 0x4, scoped, tag = 'scoped memory for tpu_custom_call.1']
    #allocation4 [shape = 's32[1]{0}', space=sflag, size = 0x4, scoped, tag = 'scoped memory for tpu_custom_call.1']
    #allocation5 [shape = 'u8[6144]{0}', space=vmem, size = 0x1800, scoped, tag = 'input window, operand 1, single buffered']
    #allocation6 [shape = 's32[1]{0}', space=sflag, size = 0x4, scoped, tag = 'scoped memory for tpu_custom_call.1']
    #allocation7 [shape = 'u8[512]{0}', space=vmem, size = 0x400, scoped, tag = 'input window, operand 2, single buffered']
    #allocation8 [shape = 'u8[49152]{0}', space=vmem, size = 0xc000, scoped, tag = 'output window, operand 0, single buffered']
    %8 = vsyncpa [#allocation3], 0
    %9 = vsyncpa [#allocation6], 0
    %10 = vsyncpa [#allocation4], 0
    // Predicated region
    $region2: #{tpu_custom_call.1} parent=1 // pred_check
      _
    $region3: #{tpu_custom_call.1} parent=1 // pred_check_branch
      %12 = sbr.rel (0) target = $region5
    $region4: #{tpu_custom_call.1} parent=1 // pred_region
      %s14 = ssub.s32 1536, 1536
      %15 = vsyncadd [#allocation3], %s14
      %s16 = sshll.u32 [#allocation2], 4
      %s17 = int_to_ptr.vmem [resolvable:$true] %s16
      %22 = dma.hbm_to_vmem [thread:$0]  %s0, 1536, %s17, [#allocation3], 64, 64, 4
    $region5: #{tpu_custom_call.1} parent=1 // pred_fallthru
      _
    // Predicated region
    $region6: #{tpu_custom_call.1} parent=1 // pred_check
      _
    $region7: #{tpu_custom_call.1} parent=1 // pred_check_branch
      %24 = sbr.rel (0) target = $region9
    $region8: #{tpu_custom_call.1} parent=1 // pred_region
      %s26 = ssub.s32 192, 192
      %27 = vsyncadd [#allocation6], %s26
      %s28 = sshll.u32 [#allocation5], 4
      %s29 = int_to_ptr.vmem [resolvable:$true] %s28
      %34 = dma.hbm_to_vmem [thread:$0]  %s1, 192, %s29, [#allocation6], 64, 64, 4
    $region9: #{tpu_custom_call.1} parent=1 // pred_fallthru
      _
    // Predicated region
    $region10: #{tpu_custom_call.1} parent=1 // pred_check
      _
    $region11: #{tpu_custom_call.1} parent=1 // pred_check_branch
      %36 = sbr.rel (0) target = $region13
    $region12: #{tpu_custom_call.1} parent=1 // pred_region
      %s38 = ssub.s32 16, 16
      %39 = vsyncadd [#allocation6], %s38
      %s41 = sshll.u32 [#allocation7], 4
      %s42 = int_to_ptr.vmem [resolvable:$true] %s41
      %44 = dma.hbm_to_vmem [thread:$0]  %s2, 16, %s42, [#allocation6]
    $region13: #{tpu_custom_call.1} parent=1 // pred_fallthru
      _
    // Predicated region
    $region14: #{tpu_custom_call.1} parent=1 // pred_check
      _
    $region15: #{tpu_custom_call.1} parent=1 // pred_check_branch
      %46 = sbr.rel (0) target = $region17
    $region16: #{tpu_custom_call.1} parent=1 // pred_region
      %47 = dma.done [#allocation3], 1536
    $region17: #{tpu_custom_call.1} parent=1 // pred_fallthru
      _
    // Predicated region
    $region18: #{tpu_custom_call.1} parent=1 // pred_check
      _
    $region19: #{tpu_custom_call.1} parent=1 // pred_check_branch
      %49 = sbr.rel (0) target = $region21
    $region20: #{tpu_custom_call.1} parent=1 // pred_region
      %50 = dma.done [#allocation6], 192
    $region21: #{tpu_custom_call.1} parent=1 // pred_fallthru
      _
    // Predicated region
    $region22: #{tpu_custom_call.1} parent=1 // pred_check
      _
    $region23: #{tpu_custom_call.1} parent=1 // pred_check_branch
      %52 = sbr.rel (0) target = $region25
    $region24: #{tpu_custom_call.1} parent=1 // pred_region
      %53 = dma.done [#allocation6], 16
    $region25: #{tpu_custom_call.1} parent=1 // pred_fallthru
      _
    %v55 = vld [vmem:[#allocation2] sm:$0xf]
    %v56 = vld [vmem:[#allocation2 + $0x4] sm:$0xf]
    %v57 = vld [vmem:[#allocation2 + $0x8] sm:$0xf]
    %v58 = vld [vmem:[#allocation2 + $0xc] sm:$0xf]
    %v59 = vld [vmem:[#allocation2 + $0x10] sm:$0xf]
    %v60 = vld [vmem:[#allocation2 + $0x14] sm:$0xf]
    %v61 = vld [vmem:[#allocation2 + $0x18] sm:$0xf]
    %v62 = vld [vmem:[#allocation2 + $0x1c] sm:$0xf]
    %v63 = vld [vmem:[#allocation2 + $0x20] sm:$0xf]
    %v64 = vld [vmem:[#allocation2 + $0x24] sm:$0xf]
    %v65 = vld [vmem:[#allocation2 + $0x28] sm:$0xf]
    %v66 = vld [vmem:[#allocation2 + $0x2c] sm:$0xf]
    %v67 = vld [vmem:[#allocation2 + $0x30] sm:$0xf]
    %v68 = vld [vmem:[#allocation2 + $0x34] sm:$0xf]
    %v69 = vld [vmem:[#allocation2 + $0x38] sm:$0xf]
    %v70 = vld [vmem:[#allocation2 + $0x3c] sm:$0xf]
    %v71 = vld [vmem:[#allocation2 + $0x40] sm:$0xf]
    %v72 = vld [vmem:[#allocation2 + $0x44] sm:$0xf]
    %v73 = vld [vmem:[#allocation2 + $0x48] sm:$0xf]
    %v74 = vld [vmem:[#allocation2 + $0x4c] sm:$0xf]
    %v75 = vld [vmem:[#allocation2 + $0x50] sm:$0xf]
    %v76 = vld [vmem:[#allocation2 + $0x54] sm:$0xf]
    %v77 = vld [vmem:[#allocation2 + $0x58] sm:$0xf]
    %v78 = vld [vmem:[#allocation2 + $0x5c] sm:$0xf]
    %v79 = vld [vmem:[#allocation5] sm:$0xf]
    %v80 = vld [vmem:[#allocation5 + $0x4] sm:$0xf]
    %v81 = vld [vmem:[#allocation5 + $0x8] sm:$0xf]
    %v82 = vld [vmem:[#allocation7] sm:$0x1]
    %v84 = vlaneseq
    %v85 = vshrl.u32 %v84, 7
    %v86 = vsub.s32 0, %v85
    %v87 = vrot.slane %v82, %v86
    %v113 = vunpack.c.l.b16 %v55
    %v114 = vunpack.c.l.b16 %v56
    %v115 = vunpack.c.l.b16 %v57
    %v116 = vunpack.c.l.b16 %v58
    %v117 = vunpack.c.l.b16 %v59
    %v118 = vunpack.c.l.b16 %v60
    %v119 = vunpack.c.l.b16 %v61
    %v120 = vunpack.c.l.b16 %v62
    %v121 = vunpack.c.l.b16 %v63
    %v122 = vunpack.c.l.b16 %v64
    %v123 = vunpack.c.l.b16 %v65
    %v124 = vunpack.c.l.b16 %v66
    %v125 = vunpack.c.l.b16 %v67
    %v126 = vunpack.c.l.b16 %v68
    %v127 = vunpack.c.l.b16 %v69
    %v128 = vunpack.c.l.b16 %v70
    %v129 = vunpack.c.l.b16 %v71
    %v130 = vunpack.c.l.b16 %v72
    %v131 = vunpack.c.l.b16 %v73
    %v132 = vunpack.c.l.b16 %v74
    %v133 = vunpack.c.l.b16 %v75
    %v134 = vunpack.c.l.b16 %v76
    %v135 = vunpack.c.l.b16 %v77
    %v136 = vunpack.c.l.b16 %v78
    %v137 = vpack.c.b16 %v114, %v113
    %v138 = vpack.c.b16 %v116, %v115
    %v139 = vpack.c.b16 %v118, %v117
    %v140 = vpack.c.b16 %v120, %v119
    %v141 = vpack.c.b16 %v122, %v121
    %v142 = vpack.c.b16 %v124, %v123
    %v143 = vpack.c.b16 %v126, %v125
    %v144 = vpack.c.b16 %v128, %v127
    %v145 = vpack.c.b16 %v130, %v129
    %v146 = vpack.c.b16 %v132, %v131
    %v147 = vpack.c.b16 %v134, %v133
    %v148 = vpack.c.b16 %v136, %v135
    %v152 = vunpack.c.l.b16 %v79
    %v153 = vunpack.c.l.b16 %v80
    %v154 = vunpack.c.l.b16 %v81
    %v155 = vpack.c.b16 %v153, %v152
    %v156 = vpack.c.b16 %v154, %v154
    %vm158 = vcmask 195584
    %v160 = vsel %vm158, %v137, 0
    %v163 = vsel %vm158, %v138, 0
    %v166 = vsel %vm158, %v139, 0
    %v169 = vsel %vm158, %v140, 0
    %v172 = vsel %vm158, %v141, 0
    %v175 = vsel %vm158, %v142, 0
    %v178 = vsel %vm158, %v143, 0
    %v181 = vsel %vm158, %v144, 0
    %v184 = vsel %vm158, %v145, 0
    %v187 = vsel %vm158, %v146, 0
    %v190 = vsel %vm158, %v147, 0
    %v193 = vsel %vm158, %v148, 0
    %vm195 = vcmask 1043456
    %v197 = vsel %vm195, %v156, 0
    %199 = vmatprep.subr.bf16.mxu0 0
    %200 = vmatpush1.bf16.msra.mxu0 %v155
    %201 = vmatprep.subr.bf16.mxu0 0
    %202 = vmatpush1.bf16.msra.mxu0 %v197
    %203 = vmatprep.subr.bf16.mxu0 0
    %204 = vmatpush1.bf16.msra.mxu0 0
    %205 = vmatprep.subr.bf16.mxu0 0
    %206 = vmatpush1.bf16.msra.mxu0 0
    %207 = vmatprep.subr.bf16.mxu0 0
    %208 = vmatpush1.bf16.msra.mxu0 0
    %209 = vmatprep.subr.bf16.mxu0 0
    %210 = vmatpush1.bf16.msra.mxu0 0
    %211 = vmatprep.subr.bf16.mxu0 0
    %212 = vmatpush1.bf16.msra.mxu0 0
    %213 = vmatprep.subr.bf16.mxu0 0
    %214 = vmatpush1.bf16.msra.mxu0 0
    %215 = vmatprep.subr.bf16.mxu0 0
    %216 = vmatpush1.bf16.msra.mxu0 0
    %217 = vmatprep.subr.bf16.mxu0 0
    %218 = vmatpush1.bf16.msra.mxu0 0
    %219 = vmatprep.subr.bf16.mxu0 0
    %220 = vmatpush1.bf16.msra.mxu0 0
    %221 = vmatprep.subr.bf16.mxu0 0
    %222 = vmatpush1.bf16.msra.mxu0 0
    %223 = vmatprep.subr.bf16.mxu0 0
    %224 = vmatpush1.bf16.msra.mxu0 0
    %225 = vmatprep.subr.bf16.mxu0 0
    %226 = vmatpush1.bf16.msra.mxu0 0
    %227 = vmatprep.subr.bf16.mxu0 0
    %228 = vmatpush1.bf16.msra.mxu0 0
    %229 = vmatprep.subr.bf16.mxu0 0
    %230 = vmatpush1.bf16.msra.mxu0 0
    %231 = vmatprep.mubr.bf16.mxu0 0
    %232 = vmatmul.mubr.bf16.gmra.mrb[0].mxu0 %v160
    %v233 = vpop.f32.mrb[0].mxu0
    %v234 = vadd.f32 %v87, %v233
    %v235 = vpop.f32.mrb[0].mxu0
    %v236 = vpop.f32.mrb[0].mxu0
    %v237 = vadd.f32 %v87, %v236
    %v238 = vpop.f32.mrb[0].mxu0
    %239 = vmatprep.mubr.bf16.mxu0 0
    %240 = vmatmul.mubr.bf16.gmra.mrb[0].mxu0 %v163
    %v241 = vpop.f32.mrb[0].mxu0
    %v242 = vadd.f32 %v87, %v241
    %v243 = vpop.f32.mrb[0].mxu0
    %v244 = vpop.f32.mrb[0].mxu0
    %v245 = vadd.f32 %v87, %v244
    %v246 = vpop.f32.mrb[0].mxu0
    %247 = vmatprep.mubr.bf16.mxu0 0
    %248 = vmatmul.mubr.bf16.gmra.mrb[0].mxu0 %v166
    %v249 = vpop.f32.mrb[0].mxu0
    %v250 = vadd.f32 %v87, %v249
    %v251 = vpop.f32.mrb[0].mxu0
    %v252 = vpop.f32.mrb[0].mxu0
    %v253 = vadd.f32 %v87, %v252
    %v254 = vpop.f32.mrb[0].mxu0
    %255 = vmatprep.mubr.bf16.mxu0 0
    %256 = vmatmul.mubr.bf16.gmra.mrb[0].mxu0 %v169
    %v257 = vpop.f32.mrb[0].mxu0
    %v258 = vadd.f32 %v87, %v257
    %v259 = vpop.f32.mrb[0].mxu0
    %v260 = vpop.f32.mrb[0].mxu0
    %v261 = vadd.f32 %v87, %v260
    %v262 = vpop.f32.mrb[0].mxu0
    %263 = vmatprep.mubr.bf16.mxu0 0
    %264 = vmatmul.mubr.bf16.gmra.mrb[0].mxu0 %v172
    %v265 = vpop.f32.mrb[0].mxu0
    %v266 = vadd.f32 %v87, %v265
    %v267 = vpop.f32.mrb[0].mxu0
    %v268 = vpop.f32.mrb[0].mxu0
    %v269 = vadd.f32 %v87, %v268
    %v270 = vpop.f32.mrb[0].mxu0
    %271 = vmatprep.mubr.bf16.mxu0 0
    %272 = vmatmul.mubr.bf16.gmra.mrb[0].mxu0 %v175
    %v273 = vpop.f32.mrb[0].mxu0
    %v274 = vadd.f32 %v87, %v273
    %v275 = vpop.f32.mrb[0].mxu0
    %v276 = vpop.f32.mrb[0].mxu0
    %v277 = vadd.f32 %v87, %v276
    %v278 = vpop.f32.mrb[0].mxu0
    %279 = vmatprep.mubr.bf16.mxu0 0
    %280 = vmatmul.mubr.bf16.gmra.mrb[0].mxu0 %v178
    %v281 = vpop.f32.mrb[0].mxu0
    %v282 = vadd.f32 %v87, %v281
    %v283 = vpop.f32.mrb[0].mxu0
    %v284 = vpop.f32.mrb[0].mxu0
    %v285 = vadd.f32 %v87, %v284
    %v286 = vpop.f32.mrb[0].mxu0
    %287 = vmatprep.mubr.bf16.mxu0 0
    %288 = vmatmul.mubr.bf16.gmra.mrb[0].mxu0 %v181
    %v289 = vpop.f32.mrb[0].mxu0
    %v290 = vadd.f32 %v87, %v289
    %v291 = vpop.f32.mrb[0].mxu0
    %v292 = vpop.f32.mrb[0].mxu0
    %v293 = vadd.f32 %v87, %v292
    %v294 = vpop.f32.mrb[0].mxu0
    %295 = vmatprep.mubr.bf16.mxu0 0
    %296 = vmatmul.mubr.bf16.gmra.mrb[0].mxu0 %v184
    %v297 = vpop.f32.mrb[0].mxu0
    %v298 = vadd.f32 %v87, %v297
    %v299 = vpop.f32.mrb[0].mxu0
    %v300 = vpop.f32.mrb[0].mxu0
    %v301 = vadd.f32 %v87, %v300
    %v302 = vpop.f32.mrb[0].mxu0
    %303 = vmatprep.mubr.bf16.mxu0 0
    %304 = vmatmul.mubr.bf16.gmra.mrb[0].mxu0 %v187
    %v305 = vpop.f32.mrb[0].mxu0
    %v306 = vadd.f32 %v87, %v305
    %v307 = vpop.f32.mrb[0].mxu0
    %v308 = vpop.f32.mrb[0].mxu0
    %v309 = vadd.f32 %v87, %v308
    %v310 = vpop.f32.mrb[0].mxu0
    %311 = vmatprep.mubr.bf16.mxu0 0
    %312 = vmatmul.mubr.bf16.gmra.mrb[0].mxu0 %v190
    %v313 = vpop.f32.mrb[0].mxu0
    %v314 = vadd.f32 %v87, %v313
    %v315 = vpop.f32.mrb[0].mxu0
    %v316 = vpop.f32.mrb[0].mxu0
    %v317 = vadd.f32 %v87, %v316
    %v318 = vpop.f32.mrb[0].mxu0
    %319 = vmatprep.mubr.bf16.mxu0 0
    %320 = vmatmul.mubr.bf16.gmra.mrb[0].mxu0 %v193
    %v321 = vpop.f32.mrb[0].mxu0
    %v322 = vadd.f32 %v87, %v321
    %v323 = vpop.f32.mrb[0].mxu0
    %v324 = vpop.f32.mrb[0].mxu0
    %v325 = vadd.f32 %v87, %v324
    %v326 = vpop.f32.mrb[0].mxu0
    %327 = vdwg.mxu0
    %v328 = vmax.f32 %v234, 0.0
    %v329 = vmax.f32 %v237, 0.0
    %v330 = vmax.f32 %v242, 0.0
    %v331 = vmax.f32 %v245, 0.0
    %v332 = vmax.f32 %v250, 0.0
    %v333 = vmax.f32 %v253, 0.0
    %v334 = vmax.f32 %v258, 0.0
    %v335 = vmax.f32 %v261, 0.0
    %v336 = vmax.f32 %v266, 0.0
    %v337 = vmax.f32 %v269, 0.0
    %v338 = vmax.f32 %v274, 0.0
    %v339 = vmax.f32 %v277, 0.0
    %v340 = vmax.f32 %v282, 0.0
    %v341 = vmax.f32 %v285, 0.0
    %v342 = vmax.f32 %v290, 0.0
    %v343 = vmax.f32 %v293, 0.0
    %v344 = vmax.f32 %v298, 0.0
    %v345 = vmax.f32 %v301, 0.0
    %v346 = vmax.f32 %v306, 0.0
    %v347 = vmax.f32 %v309, 0.0
    %v348 = vmax.f32 %v314, 0.0
    %v349 = vmax.f32 %v317, 0.0
    %v350 = vmax.f32 %v322, 0.0
    %v351 = vmax.f32 %v325, 0.0
    %v352 = vpack.c.bf16 %v329, %v328
    %v353 = vpack.c.bf16 %v331, %v330
    %v354 = vpack.c.bf16 %v333, %v332
    %v355 = vpack.c.bf16 %v335, %v334
    %v356 = vpack.c.bf16 %v337, %v336
    %v357 = vpack.c.bf16 %v339, %v338
    %v358 = vpack.c.bf16 %v341, %v340
    %v359 = vpack.c.bf16 %v343, %v342
    %v360 = vpack.c.bf16 %v345, %v344
    %v361 = vpack.c.bf16 %v347, %v346
    %v362 = vpack.c.bf16 %v349, %v348
    %v363 = vpack.c.bf16 %v351, %v350
    %v376 = vunpack.c.l.b16 %v352
    %v377 = vunpack.c.h.b16 %v352
    %v378 = vunpack.c.l.b16 %v353
    %v379 = vunpack.c.h.b16 %v353
    %v380 = vunpack.c.l.b16 %v354
    %v381 = vunpack.c.h.b16 %v354
    %v382 = vunpack.c.l.b16 %v355
    %v383 = vunpack.c.h.b16 %v355
    %v384 = vunpack.c.l.b16 %v356
    %v385 = vunpack.c.h.b16 %v356
    %v386 = vunpack.c.l.b16 %v357
    %v387 = vunpack.c.h.b16 %v357
    %v388 = vunpack.c.l.b16 %v358
    %v389 = vunpack.c.h.b16 %v358
    %v390 = vunpack.c.l.b16 %v359
    %v391 = vunpack.c.h.b16 %v359
    %v392 = vunpack.c.l.b16 %v360
    %v393 = vunpack.c.h.b16 %v360
    %v394 = vunpack.c.l.b16 %v361
    %v395 = vunpack.c.h.b16 %v361
    %v396 = vunpack.c.l.b16 %v362
    %v397 = vunpack.c.h.b16 %v362
    %v398 = vunpack.c.l.b16 %v363
    %v399 = vunpack.c.h.b16 %v363
    %v400 = vpack.c.b16 %v376, %v376
    %v401 = vpack.c.b16 %v377, %v377
    %v402 = vpack.c.b16 %v378, %v378
    %v403 = vpack.c.b16 %v379, %v379
    %v404 = vpack.c.b16 %v380, %v380
    %v405 = vpack.c.b16 %v381, %v381
    %v406 = vpack.c.b16 %v382, %v382
    %v407 = vpack.c.b16 %v383, %v383
    %v408 = vpack.c.b16 %v384, %v384
    %v409 = vpack.c.b16 %v385, %v385
    %v410 = vpack.c.b16 %v386, %v386
    %v411 = vpack.c.b16 %v387, %v387
    %v412 = vpack.c.b16 %v388, %v388
    %v413 = vpack.c.b16 %v389, %v389
    %v414 = vpack.c.b16 %v390, %v390
    %v415 = vpack.c.b16 %v391, %v391
    %v416 = vpack.c.b16 %v392, %v392
    %v417 = vpack.c.b16 %v393, %v393
    %v418 = vpack.c.b16 %v394, %v394
    %v419 = vpack.c.b16 %v395, %v395
    %v420 = vpack.c.b16 %v396, %v396
    %v421 = vpack.c.b16 %v397, %v397
    %v422 = vpack.c.b16 %v398, %v398
    %v423 = vpack.c.b16 %v399, %v399
    %vm448 = vcmask 125952
    %449 = vst.msk [vmem:[#allocation8] sm:$0xf] %vm448, %v400
    %450 = vst.msk [vmem:[#allocation8 + $0x4] sm:$0xf] %vm448, %v401
    %451 = vst.msk [vmem:[#allocation8 + $0x8] sm:$0xf] %vm448, %v402
    %452 = vst.msk [vmem:[#allocation8 + $0xc] sm:$0xf] %vm448, %v403
    %453 = vst.msk [vmem:[#allocation8 + $0x10] sm:$0xf] %vm448, %v404
    %454 = vst.msk [vmem:[#allocation8 + $0x14] sm:$0xf] %vm448, %v405
    %455 = vst.msk [vmem:[#allocation8 + $0x18] sm:$0xf] %vm448, %v406
    %456 = vst.msk [vmem:[#allocation8 + $0x1c] sm:$0xf] %vm448, %v407
    %457 = vst.msk [vmem:[#allocation8 + $0x20] sm:$0xf] %vm448, %v408
    %458 = vst.msk [vmem:[#allocation8 + $0x24] sm:$0xf] %vm448, %v409
    %459 = vst.msk [vmem:[#allocation8 + $0x28] sm:$0xf] %vm448, %v410
    %460 = vst.msk [vmem:[#allocation8 + $0x2c] sm:$0xf] %vm448, %v411
    %461 = vst.msk [vmem:[#allocation8 + $0x30] sm:$0xf] %vm448, %v412
    %462 = vst.msk [vmem:[#allocation8 + $0x34] sm:$0xf] %vm448, %v413
    %463 = vst.msk [vmem:[#allocation8 + $0x38] sm:$0xf] %vm448, %v414
    %464 = vst.msk [vmem:[#allocation8 + $0x3c] sm:$0xf] %vm448, %v415
    %465 = vst.msk [vmem:[#allocation8 + $0x40] sm:$0xf] %vm448, %v416
    %466 = vst.msk [vmem:[#allocation8 + $0x44] sm:$0xf] %vm448, %v417
    %467 = vst.msk [vmem:[#allocation8 + $0x48] sm:$0xf] %vm448, %v418
    %468 = vst.msk [vmem:[#allocation8 + $0x4c] sm:$0xf] %vm448, %v419
    %469 = vst.msk [vmem:[#allocation8 + $0x50] sm:$0xf] %vm448, %v420
    %470 = vst.msk [vmem:[#allocation8 + $0x54] sm:$0xf] %vm448, %v421
    %471 = vst.msk [vmem:[#allocation8 + $0x58] sm:$0xf] %vm448, %v422
    %472 = vst.msk [vmem:[#allocation8 + $0x5c] sm:$0xf] %vm448, %v423
    // Predicated region
    $region26: #{tpu_custom_call.1} parent=1 // pred_check
      _
    $region27: #{tpu_custom_call.1} parent=1 // pred_check_branch
      %474 = sbr.rel (0) target = $region29
    $region28: #{tpu_custom_call.1} parent=1 // pred_region
      %s476 = ssub.s32 1536, 1536
      %477 = vsyncadd [#allocation4], %s476
      %s478 = sshll.u32 [#allocation8], 4
      %s479 = int_to_ptr.vmem [resolvable:$true] %s478
      %484 = dma.vmem_to_hbm [thread:$0]  %s479, 1536, %s3, [#allocation4], 64, 64, 4
    $region29: #{tpu_custom_call.1} parent=1 // pred_fallthru
      _
    // Predicated region
    $region30: #{tpu_custom_call.1} parent=1 // pred_check
      _
    $region31: #{tpu_custom_call.1} parent=1 // pred_check_branch
      %486 = sbr.rel (0) target = $region33
    $region32: #{tpu_custom_call.1} parent=1 // pred_region
      %487 = dma.done [#allocation4], 1536
    $region33: #{tpu_custom_call.1} parent=1 // pred_fallthru
      _
    %488 = vsyncpa [#allocation3], 1
    %489 = vsyncpa [#allocation6], 1
    %490 = vsyncpa [#allocation4], 1

</llo_original>
